<compile_context>
chip_gen: v6e
topology: v6e:2x2x1
jax: 0.10.0
libtpu: 0.0.40
codegen_flags: <defaults>
</compile_context>

<pallas_src>
import jax
import jax.numpy as jnp
from jax.experimental import pallas as pl
from jax.experimental.pallas import tpu as pltpu


def _mlp_kernel(x_ref, w1_ref, b1_ref, w2_ref, b2_ref, o_ref):
    # x_ref:  (tb, in)     batch-major input tile
    # w1_ref: (size, in)   b1_ref: (size, 1)
    # w2_ref: (out, size)  b2_ref: (out, 1)
    # o_ref:  (out, tb)    lane-dense over the batch
    xt = x_ref[...].T                       # (in, tb): small in-VMEM relayout (XLU)
    w1 = w1_ref[...]
    in_features = xt.shape[0]

    # fc1: K=4 contraction as broadcast-FMAs on the VPU (a K=4 MXU matmul pays
    # fill/drain latency for <2% utilization).  b1 is folded into the first
    # term so there is no separate (size, tb) bias pass.
    h = b1_ref[...] + w1[:, 0:1] * xt[0:1, :]
    for k in range(1, in_features):
        h = h + w1[:, k:k + 1] * xt[k:k + 1, :]
    h = jax.nn.sigmoid(h)                   # (size, tb): fully packed vregs (VPU/EUP)

    # fc2: K=size contraction on the MXU in f32; the (out, tb) result is
    # lane-dense so the final store is an unmasked vst.
    y = jnp.dot(w2_ref[...], h, preferred_element_type=jnp.float32)
    o_ref[...] = (y + b2_ref[...]).astype(o_ref.dtype)


def _choose_tile(batch, size, requested=None):
    """Pick the batch (lane) tile and number of grid steps.

    Per-step VMEM ~= 4*size*tb (hidden) + 2 * 4*(4+3)*tb (double-buffered
    x/out tiles).  Budget against 8 MiB so the choice fits every generation's
    default scoped VMEM (incl. v7x's smaller VMEM), and cap at 16384 lanes
    where per-step overhead is already negligible.
    """
    bytes_per_col = 4 * (size + 2 * (4 + 3))
    cap_cols = max(1, min((8 << 20) // (bytes_per_col * 128), 128))
    if requested is not None:
        # Honor caller hint but clamp/round to a multiple of 128.
        cap_cols = max(1, min(cap_cols, requested // 128))
    if batch <= 256:
        return batch, 1                     # too small to split: one full-array tile
    n_cols = pl.cdiv(batch, 128)
    # Even number of balanced, 128-aligned tiles (v7x megacore balance).
    n_steps = max(2, pl.cdiv(n_cols, cap_cols))
    n_steps += n_steps % 2
    tb = pl.cdiv(n_cols, n_steps) * 128
    return tb, pl.cdiv(batch, tb)


def fc_baseline_forward(x, w1, b1, w2, b2, *, tb=None):
    """x: (B, 4); w1: (size, 4); b1: (size, 1); w2: (3, size); b2: (3, 1)."""
    B, in_features = x.shape
    size = w1.shape[0]
    out_dim = w2.shape[0]

    tile, steps = _choose_tile(B, size, tb)

    out_t = pl.pallas_call(
        _mlp_kernel,
        out_shape=jax.ShapeDtypeStruct((out_dim, B), x.dtype),
        grid_spec=pltpu.PrefetchScalarGridSpec(
            num_scalar_prefetch=0,
            grid=(steps,),
            in_specs=[
                pl.BlockSpec((tile, in_features), lambda i: (i, 0)),   # x tile
                pl.BlockSpec((size, in_features), lambda i: (0, 0)),   # W1 (VMEM-resident)
                pl.BlockSpec((size, 1), lambda i: (0, 0)),             # b1 (resident)
                pl.BlockSpec((out_dim, size), lambda i: (0, 0)),       # W2 (resident)
                pl.BlockSpec((out_dim, 1), lambda i: (0, 0)),          # b2 (resident)
            ],
            out_specs=pl.BlockSpec((out_dim, tile), lambda i: (0, i)),
        ),
        compiler_params=pltpu.CompilerParams(
            dimension_semantics=("parallel",)),
    )(x, w1, b1, w2, b2)

    # Kernel output is lane-dense (out, B); one tiny transpose of 12*B bytes
    # gives the conventional (B, out) result expected from the module.
    return out_t.T


def init_params(key, size):
    """Deterministic init mimicking nn.Linear (uniform +/- 1/sqrt(fan_in))."""
    k1, k2, k3, k4 = jax.random.split(key, 4)
    bound1 = 1.0 / jnp.sqrt(4.0)
    bound2 = 1.0 / jnp.sqrt(float(size))
    # nn.Linear layout: weight (out_features, in_features); bias as a column.
    w1 = jax.random.uniform(k1, (size, 4), jnp.float32, -bound1, bound1)
    b1 = jax.random.uniform(k2, (size, 1), jnp.float32, -bound1, bound1)
    w2 = jax.random.uniform(k3, (3, size), jnp.float32, -bound2, bound2)
    b2 = jax.random.uniform(k4, (3, 1), jnp.float32, -bound2, bound2)
    return w1, b1, w2, b2


if __name__ == "__main__":
    key = jax.random.PRNGKey(0)
    size = 32            # hidden width of FcBaseLine
    batch = 1030         # non-multiple of 128: exercises the ragged boundary block

    kx, kp = jax.random.split(key)
    x = jax.random.normal(kx, (batch, 4), jnp.float32)
    w1, b1, w2, b2 = init_params(kp, size)

    # Reference in plain JAX (same math as the PyTorch module).
    ref = jax.nn.sigmoid(x @ w1.T + b1[:, 0]) @ w2.T + b2[:, 0]

    # Default path: even 2-step grid over the batch (no padding, ragged tail).
    forward = jax.jit(fc_baseline_forward)
    out = jax.block_until_ready(forward(x, w1, b1, w2, b2))
    assert out.shape == (batch, 3)
    assert jnp.allclose(out, ref, atol=1e-5, rtol=1e-5), "mismatch vs reference"

    # Forced small tile: longer multi-step grid with VMEM-resident weights.
    forward_tiled = jax.jit(lambda *a: fc_baseline_forward(*a, tb=256))
    out2 = jax.block_until_ready(forward_tiled(x, w1, b1, w2, b2))
    assert jnp.allclose(out2, ref, atol=1e-5, rtol=1e-5), "mismatch (tiled) vs reference"

    print("KERNEL_OK")
</pallas_src>

<mosaic_0001>
module attributes {stable_mosaic.version = 11 : i64} {
  func.func @_mlp_kernel(%arg0: i32, %arg1: memref<640x4xf32, #tpu.memory_space<vmem>>, %arg2: memref<32x4xf32, #tpu.memory_space<vmem>>, %arg3: memref<32x1xf32, #tpu.memory_space<vmem>>, %arg4: memref<3x32xf32, #tpu.memory_space<vmem>>, %arg5: memref<3x1xf32, #tpu.memory_space<vmem>>, %arg6: memref<3x640xf32, #tpu.memory_space<vmem>>) attributes {dimension_semantics = [#tpu.dimension_semantics<parallel>], iteration_bounds = array<i64: 2>, scalar_prefetch = 0 : i64, scratch_operands = 0 : i64, tpu.core_type = #tpu.core_type<tc>, window_params = [{transform_indices = @transform_0, window_bounds = array<i64: 640, 4>}, {pipeline_mode = #tpu.pipeline_mode<synchronous>, transform_indices = @transform_1, window_bounds = array<i64: 32, 4>}, {pipeline_mode = #tpu.pipeline_mode<synchronous>, transform_indices = @transform_2, window_bounds = array<i64: 32, 1>}, {pipeline_mode = #tpu.pipeline_mode<synchronous>, transform_indices = @transform_3, window_bounds = array<i64: 3, 32>}, {pipeline_mode = #tpu.pipeline_mode<synchronous>, transform_indices = @transform_4, window_bounds = array<i64: 3, 1>}, {transform_indices = @transform_5, window_bounds = array<i64: 3, 640>}]} {
    %c0 = arith.constant 0 : index
    %c0_0 = arith.constant 0 : index
    %0 = vector.load %arg1[%c0, %c0_0] : memref<640x4xf32, #tpu.memory_space<vmem>>, vector<640x4xf32>
    %1 = tpu.transpose %0, [1, 0] : vector<640x4xf32> -> vector<4x640xf32>
    %c0_1 = arith.constant 0 : index
    %c0_2 = arith.constant 0 : index
    %2 = vector.load %arg2[%c0_1, %c0_2] : memref<32x4xf32, #tpu.memory_space<vmem>>, vector<32x4xf32>
    %c0_3 = arith.constant 0 : index
    %c0_4 = arith.constant 0 : index
    %3 = vector.load %arg3[%c0_3, %c0_4] : memref<32x1xf32, #tpu.memory_space<vmem>>, vector<32x1xf32>
    %4 = vector.extract_strided_slice %2 {offsets = [0, 0], sizes = [32, 1], strides = [1, 1]} : vector<32x4xf32> to vector<32x1xf32>
    %5 = vector.extract_strided_slice %1 {offsets = [0, 0], sizes = [1, 640], strides = [1, 1]} : vector<4x640xf32> to vector<1x640xf32>
    %6 = vector.broadcast %4 : vector<32x1xf32> to vector<32x640xf32>
    %7 = vector.broadcast %5 : vector<1x640xf32> to vector<32x640xf32>
    %8 = arith.mulf %6, %7 : vector<32x640xf32>
    %9 = vector.broadcast %3 : vector<32x1xf32> to vector<32x640xf32>
    %10 = arith.addf %9, %8 : vector<32x640xf32>
    %11 = vector.extract_strided_slice %2 {offsets = [0, 1], sizes = [32, 1], strides = [1, 1]} : vector<32x4xf32> to vector<32x1xf32>
    %12 = vector.extract_strided_slice %1 {offsets = [1, 0], sizes = [1, 640], strides = [1, 1]} : vector<4x640xf32> to vector<1x640xf32>
    %13 = vector.broadcast %11 : vector<32x1xf32> to vector<32x640xf32>
    %14 = vector.broadcast %12 : vector<1x640xf32> to vector<32x640xf32>
    %15 = arith.mulf %13, %14 : vector<32x640xf32>
    %16 = arith.addf %10, %15 : vector<32x640xf32>
    %17 = vector.extract_strided_slice %2 {offsets = [0, 2], sizes = [32, 1], strides = [1, 1]} : vector<32x4xf32> to vector<32x1xf32>
    %18 = vector.extract_strided_slice %1 {offsets = [2, 0], sizes = [1, 640], strides = [1, 1]} : vector<4x640xf32> to vector<1x640xf32>
    %19 = vector.broadcast %17 : vector<32x1xf32> to vector<32x640xf32>
    %20 = vector.broadcast %18 : vector<1x640xf32> to vector<32x640xf32>
    %21 = arith.mulf %19, %20 : vector<32x640xf32>
    %22 = arith.addf %16, %21 : vector<32x640xf32>
    %23 = vector.extract_strided_slice %2 {offsets = [0, 3], sizes = [32, 1], strides = [1, 1]} : vector<32x4xf32> to vector<32x1xf32>
    %24 = vector.extract_strided_slice %1 {offsets = [3, 0], sizes = [1, 640], strides = [1, 1]} : vector<4x640xf32> to vector<1x640xf32>
    %25 = vector.broadcast %23 : vector<32x1xf32> to vector<32x640xf32>
    %26 = vector.broadcast %24 : vector<1x640xf32> to vector<32x640xf32>
    %27 = arith.mulf %25, %26 : vector<32x640xf32>
    %28 = arith.addf %22, %27 : vector<32x640xf32>
    %29 = arith.negf %28 : vector<32x640xf32>
    %30 = math.exp %29 : vector<32x640xf32>
    %cst = arith.constant 1.000000e+00 : f32
    %31 = vector.broadcast %cst : f32 to vector<32x640xf32>
    %32 = arith.addf %31, %30 : vector<32x640xf32>
    %33 = arith.divf %31, %32 : vector<32x640xf32>
    %c0_5 = arith.constant 0 : index
    %c0_6 = arith.constant 0 : index
    %34 = vector.load %arg4[%c0_5, %c0_6] : memref<3x32xf32, #tpu.memory_space<vmem>>, vector<3x32xf32>
    %cst_7 = arith.constant dense<0.000000e+00> : vector<3x640xf32>
    %35 = tpu.matmul %34, %33, %cst_7 {dimension_numbers = #tpu.dot_dimension_numbers<[1], [0], [0], [1], [0, 0, 1, 1], [], []>} : vector<3x32xf32>, vector<32x640xf32>, vector<3x640xf32> -> vector<3x640xf32>
    %c0_8 = arith.constant 0 : index
    %c0_9 = arith.constant 0 : index
    %36 = vector.load %arg5[%c0_8, %c0_9] : memref<3x1xf32, #tpu.memory_space<vmem>>, vector<3x1xf32>
    %37 = vector.broadcast %36 : vector<3x1xf32> to vector<3x640xf32>
    %38 = arith.addf %35, %37 : vector<3x640xf32>
    %c0_10 = arith.constant 0 : index
    %c0_11 = arith.constant 0 : index
    %39 = vector.load %arg6[%c0_10, %c0_11] : memref<3x640xf32, #tpu.memory_space<vmem>>, vector<3x640xf32>
    tpu.vector_store %arg6[%c0_10, %c0_11], %38 {strides = array<i32>} : memref<3x640xf32, #tpu.memory_space<vmem>>, vector<3x640xf32>,
    return
  }
  func.func @transform_0(%arg0: i32) -> (i32, i32) {
    %c0_i32 = arith.constant 0 : i32
    %c0_i32_0 = arith.constant 0 : i32
    return %arg0, %c0_i32 : i32, i32
  }
  func.func @transform_1(%arg0: i32) -> (i32, i32) {
    %c0_i32 = arith.constant 0 : i32
    %c0_i32_0 = arith.constant 0 : i32
    %c0_i32_1 = arith.constant 0 : i32
    return %c0_i32, %c0_i32_0 : i32, i32
  }
  func.func @transform_2(%arg0: i32) -> (i32, i32) {
    %c0_i32 = arith.constant 0 : i32
    %c0_i32_0 = arith.constant 0 : i32
    %c0_i32_1 = arith.constant 0 : i32
    return %c0_i32, %c0_i32_0 : i32, i32
  }
  func.func @transform_3(%arg0: i32) -> (i32, i32) {
    %c0_i32 = arith.constant 0 : i32
    %c0_i32_0 = arith.constant 0 : i32
    %c0_i32_1 = arith.constant 0 : i32
    return %c0_i32, %c0_i32_0 : i32, i32
  }
  func.func @transform_4(%arg0: i32) -> (i32, i32) {
    %c0_i32 = arith.constant 0 : i32
    %c0_i32_0 = arith.constant 0 : i32
    %c0_i32_1 = arith.constant 0 : i32
    return %c0_i32, %c0_i32_0 : i32, i32
  }
  func.func @transform_5(%arg0: i32) -> (i32, i32) {
    %c0_i32 = arith.constant 0 : i32
    %c0_i32_0 = arith.constant 0 : i32
    return %c0_i32, %arg0 : i32, i32
  }
}

</mosaic_0001>

<llo_original>
// kernel: fc_baseline_forward.1
$region0: #{fc_baseline_forward.1}
  #allocation0 [shape = 'u32[]', space=smem, size = 0x4, offset = 0x4, fixed_abs, tag = 'smem constant byte address 0x4 - core index']
  #allocation1 [shape = 'u32[144,128]{1,0:T(1,128)}', space=vmem, size = 0x12000, scoped, tag = 'internal scratch']
  %s0 = inlined_call_operand.vmem [shape: f32[1030,4], index: 0, kind: input, shape index: {}]
  %s1 = inlined_call_operand.vmem [shape: f32[32,4], index: 1, kind: input, shape index: {}]
  %s2 = inlined_call_operand.vmem [shape: f32[32,1], index: 2, kind: input, shape index: {}]
  %s3 = inlined_call_operand.vmem [shape: f32[3,32], index: 3, kind: input, shape index: {}]
  %s4 = inlined_call_operand.vmem [shape: f32[3,1], index: 4, kind: input, shape index: {}]
  %s5 = inlined_call_operand.hbm [shape: f32[3,1030], index: 5, kind: output, shape index: {}]
  %s6 = sld [smem:[#allocation0]]
  $region53: #{fc_baseline_forward.1} parent=0
    _
  %s8 = ssub.s32 1, %s6
  %s9 = scalar_select 0, %s8, %s6
  $region1: #{fc_baseline_forward.1} parent=0
    #allocation2 [shape = 'u8[20480]{0}', space=vmem, size = 0x5000, scoped, tag = 'output window, operand 0']
    #allocation3 [shape = 's32[2]{0}', space=sflag, size = 0x8, scoped, tag = 'scoped memory for fc_baseline_forward.1']
    %10 = vsyncpa [#allocation3], 0
    %s11 = scalar_lea.sflag [#allocation3], 1
    %12 = vsyncpa %s11, 0
    loop: start=0, step=1, limit=4
    $region2: #{fc_baseline_forward.1} parent=1 // loop_pre_header
      _
    $region3: #{fc_baseline_forward.1} parent=1 // loop_header
      %s14 = sphi 0, %s18
      %p15 = scmp.ge.s32.totalorder %s14, 4
      %s24 = sphi 0, %s26
      %s27 = sphi 0, %s24
      %s28 = sphi 0, %s27
      %s44 = sphi 0, %s28
      %s48 = sphi 0, %s48
      %s50 = sphi 0, %s48
      %s51 = sphi 0, %s50
      %s65 = sphi 0, %s51
      %s69 = sphi 0, %s69
      %s71 = sphi 0, %s69
      %s72 = sphi 0, %s71
      %s86 = sphi 0, %s72
      %s90 = sphi 0, %s90
      %s92 = sphi 0, %s90
      %s93 = sphi 0, %s92
      %s107 = sphi 0, %s93
      %s111 = sphi 0, %s111
      %s113 = sphi 0, %s111
      %s114 = sphi 0, %s113
      %s128 = sphi 0, %s114
      %s134 = sphi 0, %s136
      %s137 = sphi 0, %s134
      %s138 = sphi 0, %s137
      %s154 = sphi 0, %s138
    $region4: #{fc_baseline_forward.1} parent=1 // loop_header_branch
      %17 = sbr.rel (%p15) target = $region8
    $region5: #{fc_baseline_forward.1} parent=1 // loop_body
      %s19 = ssub.s32 %s14, 1
      %s20 = ssub.s32 %s14, 2
      %s21 = sadd.s32 %s14, 1
      %s22 = ssub.s32 %s14, %s21
      %p23 = scmp.eq.s32.totalorder %s22, 0
      %s25 = sadd.s32 %s24, 1
      %s26 = scalar_select %p23, %s24, %s25
      %p29 = pneg %p23
      %p30 = scmp.eq.s32.totalorder %s14, 1
      %p31 = por %p29, %p30
      %p32 = scmp.ne.s32.totalorder %s24, %s27
      %p33 = scmp.eq.s32.totalorder %s14, 0
      %p34 = por %p32, %p33
      %p35 = scmp.ne.s32.totalorder %s24, %s27
      %p36 = scmp.eq.s32.totalorder %s19, 1
      %p37 = por %p35, %p36
      %p38 = scmp.ne.s32.totalorder %s27, %s28
      %p39 = scmp.eq.s32.totalorder %s19, 0
      %p40 = por %p38, %p39
      %p41 = scmp.ne.s32.totalorder %s27, %s28
      %p42 = scmp.eq.s32.totalorder %s20, 1
      %p43 = por %p41, %p42
      %p45 = scmp.ne.s32.totalorder %s28, %s44
      %p46 = scmp.eq.s32.totalorder %s20, 0
      %p47 = por %p45, %p46
      %s49 = sadd.s32 %s48, 1
      %p52 = scmp.eq.s32.totalorder %s14, 1
      %p53 = scmp.ne.s32.totalorder %s48, %s50
      %p54 = scmp.eq.s32.totalorder %s14, 0
      %p55 = por %p53, %p54
      %p56 = scmp.ne.s32.totalorder %s48, %s50
      %p57 = scmp.eq.s32.totalorder %s19, 1
      %p58 = por %p56, %p57
      %p59 = scmp.ne.s32.totalorder %s50, %s51
      %p60 = scmp.eq.s32.totalorder %s19, 0
      %p61 = por %p59, %p60
      %p62 = scmp.ne.s32.totalorder %s50, %s51
      %p63 = scmp.eq.s32.totalorder %s20, 1
      %p64 = por %p62, %p63
      %p66 = scmp.ne.s32.totalorder %s51, %s65
      %p67 = scmp.eq.s32.totalorder %s20, 0
      %p68 = por %p66, %p67
      %s70 = sadd.s32 %s69, 1
      %p73 = scmp.eq.s32.totalorder %s14, 1
      %p74 = scmp.ne.s32.totalorder %s69, %s71
      %p75 = scmp.eq.s32.totalorder %s14, 0
      %p76 = por %p74, %p75
      %p77 = scmp.ne.s32.totalorder %s69, %s71
      %p78 = scmp.eq.s32.totalorder %s19, 1
      %p79 = por %p77, %p78
      %p80 = scmp.ne.s32.totalorder %s71, %s72
      %p81 = scmp.eq.s32.totalorder %s19, 0
      %p82 = por %p80, %p81
      %p83 = scmp.ne.s32.totalorder %s71, %s72
      %p84 = scmp.eq.s32.totalorder %s20, 1
      %p85 = por %p83, %p84
      %p87 = scmp.ne.s32.totalorder %s72, %s86
      %p88 = scmp.eq.s32.totalorder %s20, 0
      %p89 = por %p87, %p88
      %s91 = sadd.s32 %s90, 1
      %p94 = scmp.eq.s32.totalorder %s14, 1
      %p95 = scmp.ne.s32.totalorder %s90, %s92
      %p96 = scmp.eq.s32.totalorder %s14, 0
      %p97 = por %p95, %p96
      %p98 = scmp.ne.s32.totalorder %s90, %s92
      %p99 = scmp.eq.s32.totalorder %s19, 1
      %p100 = por %p98, %p99
      %p101 = scmp.ne.s32.totalorder %s92, %s93
      %p102 = scmp.eq.s32.totalorder %s19, 0
      %p103 = por %p101, %p102
      %p104 = scmp.ne.s32.totalorder %s92, %s93
      %p105 = scmp.eq.s32.totalorder %s20, 1
      %p106 = por %p104, %p105
      %p108 = scmp.ne.s32.totalorder %s93, %s107
      %p109 = scmp.eq.s32.totalorder %s20, 0
      %p110 = por %p108, %p109
      %s112 = sadd.s32 %s111, 1
      %p115 = scmp.eq.s32.totalorder %s14, 1
      %p116 = scmp.ne.s32.totalorder %s111, %s113
      %p117 = scmp.eq.s32.totalorder %s14, 0
      %p118 = por %p116, %p117
      %p119 = scmp.ne.s32.totalorder %s111, %s113
      %p120 = scmp.eq.s32.totalorder %s19, 1
      %p121 = por %p119, %p120
      %p122 = scmp.ne.s32.totalorder %s113, %s114
      %p123 = scmp.eq.s32.totalorder %s19, 0
      %p124 = por %p122, %p123
      %p125 = scmp.ne.s32.totalorder %s113, %s114
      %p126 = scmp.eq.s32.totalorder %s20, 1
      %p127 = por %p125, %p126
      %p129 = scmp.ne.s32.totalorder %s114, %s128
      %p130 = scmp.eq.s32.totalorder %s20, 0
      %p131 = por %p129, %p130
      %s132 = ssub.s32 %s14, %s21
      %p133 = scmp.eq.s32.totalorder %s132, 0
      %s135 = sadd.s32 %s134, 1
      %s136 = scalar_select %p133, %s134, %s135
      %p139 = pneg %p133
      %p140 = scmp.eq.s32.totalorder %s14, 1
      %p141 = por %p139, %p140
      %p142 = scmp.ne.s32.totalorder %s134, %s137
      %p143 = scmp.eq.s32.totalorder %s14, 0
      %p144 = por %p142, %p143
      %p145 = scmp.ne.s32.totalorder %s134, %s137
      %p146 = scmp.eq.s32.totalorder %s19, 1
      %p147 = por %p145, %p146
      %p148 = scmp.ne.s32.totalorder %s137, %s138
      %p149 = scmp.eq.s32.totalorder %s19, 0
      %p150 = por %p148, %p149
      %p151 = scmp.ne.s32.totalorder %s137, %s138
      %p152 = scmp.eq.s32.totalorder %s20, 1
      %p153 = por %p151, %p152
      %p155 = scmp.ne.s32.totalorder %s138, %s154
      %p156 = scmp.eq.s32.totalorder %s20, 0
      %p157 = por %p155, %p156
      %p158 = scmp.le.s32.totalorder 1, %s14
      %p159 = scmp.lt.s32.totalorder %s14, 3
      %p160 = pnand %p158, %p159
      %p161 = pneg %p160
      // Predicated region
      $region9: #{fc_baseline_forward.1} parent=5 // pred_check
        _
      $region10: #{fc_baseline_forward.1} parent=5 // pred_check_branch
        %163 = sbr.rel (%p160) target = $region12
      $region11: #{fc_baseline_forward.1} parent=5 // pred_region
        %s164 = ssub.s32 %s14, 1
        // Predicated region
        $region13: #{fc_baseline_forward.1} parent=11 // pred_check
          %p165 = pneg %p61
        $region14: #{fc_baseline_forward.1} parent=11 // pred_check_branch
          %167 = sbr.rel (%p165) target = $region16
        $region15: #{fc_baseline_forward.1} parent=11 // pred_region
          _
        $region16: #{fc_baseline_forward.1} parent=11 // pred_fallthru
          _
        // Predicated region
        $region17: #{fc_baseline_forward.1} parent=11 // pred_check
          %p168 = pneg %p82
        $region18: #{fc_baseline_forward.1} parent=11 // pred_check_branch
          %170 = sbr.rel (%p168) target = $region20
        $region19: #{fc_baseline_forward.1} parent=11 // pred_region
          _
        $region20: #{fc_baseline_forward.1} parent=11 // pred_fallthru
          _
        // Predicated region
        $region21: #{fc_baseline_forward.1} parent=11 // pred_check
          %p171 = pneg %p103
        $region22: #{fc_baseline_forward.1} parent=11 // pred_check_branch
          %173 = sbr.rel (%p171) target = $region24
        $region23: #{fc_baseline_forward.1} parent=11 // pred_region
          _
        $region24: #{fc_baseline_forward.1} parent=11 // pred_fallthru
          _
        // Predicated region
        $region25: #{fc_baseline_forward.1} parent=11 // pred_check
          %p174 = pneg %p124
        $region26: #{fc_baseline_forward.1} parent=11 // pred_check_branch
          %176 = sbr.rel (%p174) target = $region28
        $region27: #{fc_baseline_forward.1} parent=11 // pred_region
          _
        $region28: #{fc_baseline_forward.1} parent=11 // pred_fallthru
          _
      $region12: #{fc_baseline_forward.1} parent=5 // pred_fallthru
        _
      %p177 = scmp.lt.s32.totalorder %s14, 2
      // Predicated region
      $region29: #{fc_baseline_forward.1} parent=5 // pred_check
        %p178 = pneg %p177
      $region30: #{fc_baseline_forward.1} parent=5 // pred_check_branch
        %180 = sbr.rel (%p178) target = $region32
      $region31: #{fc_baseline_forward.1} parent=5 // pred_region
        // Predicated region
        $region33: #{fc_baseline_forward.1} parent=31 // pred_check
          %p181 = pneg %p34
        $region34: #{fc_baseline_forward.1} parent=31 // pred_check_branch
          %183 = sbr.rel (%p181) target = $region36
        $region35: #{fc_baseline_forward.1} parent=31 // pred_region
          %s184 = smul.u32 80, %s14
          %s185 = ssub.s32 129, %s184
          %p186 = scmp.lt.s32.totalorder %s185, 80
          %s187 = scalar_select %p186, %s185, 80
          %s188 = smul.u32 128, %s187
          %p189 = scmp.lt.s32.totalorder %s184, 128
          %s190 = scalar_select %p189, %s184, 128
          %s191 = smul.addr %s190, 8
          %s192 = scalar_lea.vmem %s0, %s191
          %s193 = smul.u32 80, %s14
          %s194 = ssub.s32 129, %s193
          %p195 = scmp.lt.s32.totalorder %s194, 80
          %s196 = scalar_select %p195, %s194, 80
          %s197 = smul.u32 128, %s196
        $region36: #{fc_baseline_forward.1} parent=31 // pred_fallthru
          _
      $region32: #{fc_baseline_forward.1} parent=5 // pred_fallthru
        _
      %p198 = scmp.le.s32.totalorder 1, %s14
      %p199 = scmp.lt.s32.totalorder %s14, 3
      %p200 = pnand %p198, %p199
      %p201 = pneg %p200
      // Predicated region
      $region37: #{fc_baseline_forward.1} parent=5 // pred_check
        _
      $region38: #{fc_baseline_forward.1} parent=5 // pred_check_branch
        %203 = sbr.rel (%p200) target = $region40
      $region39: #{fc_baseline_forward.1} parent=5 // pred_region
        %s204 = ssub.s32 %s14, 1
        %s205 = smul.u32 80, %s19
        %s206 = ssub.s32 129, %s205
        %p207 = scmp.lt.s32.totalorder %s206, 80
        %s208 = scalar_select %p207, %s206, 80
        %s209 = smul.u32 128, %s208
        %p210 = scmp.lt.s32.totalorder %s205, 128
        %s211 = scalar_select %p210, %s205, 128
        %s212 = smul.addr %s211, 8
        %s213 = scalar_lea.vmem %s0, %s212
        %p214 = pneg %p40
        %p215 = pneg %p37
        %p216 = pneg %p61
        %p217 = pneg %p58
        %p218 = pneg %p82
        %p219 = pneg %p79
        %p220 = pneg %p103
        %p221 = pneg %p100
        %p222 = pneg %p124
        %p223 = pneg %p121
        %p224 = pneg %p150
        %p225 = pneg %p147
        %s226 = sand.u32 %s137, 1
        %s227 = scalar_lea.sflag [#allocation3], %s226
        %s228 = sand.u32 %s137, 1
        %s229 = smul.addr %s228, 20
        %s230 = scalar_lea.vmem [#allocation2], %s229
        %s231 = smul.u32 80, %s19
        %s232 = ssub.s32 129, %s231
        %p233 = scmp.lt.s32.totalorder %s232, 80
        %s234 = scalar_select %p233, %s232, 80
        %s235 = smul.u32 128, %s234
        %p236 = scmp.lt.s32.totalorder %s231, 128
        %s237 = scalar_select %p236, %s231, 128
        %s238 = smul.addr %s237, 8
        %s239 = scalar_lea.vmem %s0, %s238
        %s240 = smul.u32 80, %s19
        %s241 = ssub.s32 129, %s240
        %p242 = scmp.lt.s32.totalorder %s241, 80
        %s243 = scalar_select %p242, %s241, 80
        %s244 = smul.u32 128, %s243
        %s245 = smul.u32 5, %s19
        %s246 = ssub.s32 9, %s245
        %p247 = scmp.lt.s32.totalorder %s246, 5
        %s248 = scalar_select %p247, %s246, 5
        %s249 = smul.u32 64, %s248
        %v250 = vld [vmem:[%s239] sm:$0xff]
        %v251 = vld [vmem:[%s239 + $0x8] sm:$0xff]
        %v252 = vld [vmem:[%s239 + $0x10] sm:$0xff]
        %v253 = vld [vmem:[%s239 + $0x18] sm:$0xff]
        %v254 = vld [vmem:[%s239 + $0x20] sm:$0xff]
        %v255 = vld [vmem:[%s239 + $0x28] sm:$0xff]
        %v256 = vld [vmem:[%s239 + $0x30] sm:$0xff]
        %v257 = vld [vmem:[%s239 + $0x38] sm:$0xff]
        %v258 = vld [vmem:[%s239 + $0x40] sm:$0xff]
        %v259 = vld [vmem:[%s239 + $0x48] sm:$0xff]
        %v260 = vld [vmem:[%s239 + $0x50] sm:$0xff]
        %v261 = vld [vmem:[%s239 + $0x58] sm:$0xff]
        %v262 = vld [vmem:[%s239 + $0x60] sm:$0xff]
        %v263 = vld [vmem:[%s239 + $0x68] sm:$0xff]
        %v264 = vld [vmem:[%s239 + $0x70] sm:$0xff]
        %v265 = vld [vmem:[%s239 + $0x78] sm:$0xff]
        %v266 = vld [vmem:[%s239 + $0x80] sm:$0xff]
        %v267 = vld [vmem:[%s239 + $0x88] sm:$0xff]
        %v268 = vld [vmem:[%s239 + $0x90] sm:$0xff]
        %v269 = vld [vmem:[%s239 + $0x98] sm:$0xff]
        %v270 = vld [vmem:[%s239 + $0xa0] sm:$0xff]
        %v271 = vld [vmem:[%s239 + $0xa8] sm:$0xff]
        %v272 = vld [vmem:[%s239 + $0xb0] sm:$0xff]
        %v273 = vld [vmem:[%s239 + $0xb8] sm:$0xff]
        %v274 = vld [vmem:[%s239 + $0xc0] sm:$0xff]
        %v275 = vld [vmem:[%s239 + $0xc8] sm:$0xff]
        %v276 = vld [vmem:[%s239 + $0xd0] sm:$0xff]
        %v277 = vld [vmem:[%s239 + $0xd8] sm:$0xff]
        %v278 = vld [vmem:[%s239 + $0xe0] sm:$0xff]
        %v279 = vld [vmem:[%s239 + $0xe8] sm:$0xff]
        %v280 = vld [vmem:[%s239 + $0xf0] sm:$0xff]
        %v281 = vld [vmem:[%s239 + $0xf8] sm:$0xff]
        %v282 = vld [vmem:[%s239 + $0x100] sm:$0xff]
        %v283 = vld [vmem:[%s239 + $0x108] sm:$0xff]
        %v284 = vld [vmem:[%s239 + $0x110] sm:$0xff]
        %v285 = vld [vmem:[%s239 + $0x118] sm:$0xff]
        %v286 = vld [vmem:[%s239 + $0x120] sm:$0xff]
        %v287 = vld [vmem:[%s239 + $0x128] sm:$0xff]
        %v288 = vld [vmem:[%s239 + $0x130] sm:$0xff]
        %v289 = vld [vmem:[%s239 + $0x138] sm:$0xff]
        %v290 = vld [vmem:[%s239 + $0x140] sm:$0xff]
        %v291 = vld [vmem:[%s239 + $0x148] sm:$0xff]
        %v292 = vld [vmem:[%s239 + $0x150] sm:$0xff]
        %v293 = vld [vmem:[%s239 + $0x158] sm:$0xff]
        %v294 = vld [vmem:[%s239 + $0x160] sm:$0xff]
        %v295 = vld [vmem:[%s239 + $0x168] sm:$0xff]
        %v296 = vld [vmem:[%s239 + $0x170] sm:$0xff]
        %v297 = vld [vmem:[%s239 + $0x178] sm:$0xff]
        %v298 = vld [vmem:[%s239 + $0x180] sm:$0xff]
        %v299 = vld [vmem:[%s239 + $0x188] sm:$0xff]
        %v300 = vld [vmem:[%s239 + $0x190] sm:$0xff]
        %v301 = vld [vmem:[%s239 + $0x198] sm:$0xff]
        %v302 = vld [vmem:[%s239 + $0x1a0] sm:$0xff]
        %v303 = vld [vmem:[%s239 + $0x1a8] sm:$0xff]
        %v304 = vld [vmem:[%s239 + $0x1b0] sm:$0xff]
        %v305 = vld [vmem:[%s239 + $0x1b8] sm:$0xff]
        %v306 = vld [vmem:[%s239 + $0x1c0] sm:$0xff]
        %v307 = vld [vmem:[%s239 + $0x1c8] sm:$0xff]
        %v308 = vld [vmem:[%s239 + $0x1d0] sm:$0xff]
        %v309 = vld [vmem:[%s239 + $0x1d8] sm:$0xff]
        %v310 = vld [vmem:[%s239 + $0x1e0] sm:$0xff]
        %v311 = vld [vmem:[%s239 + $0x1e8] sm:$0xff]
        %v312 = vld [vmem:[%s239 + $0x1f0] sm:$0xff]
        %v313 = vld [vmem:[%s239 + $0x1f8] sm:$0xff]
        %v314 = vld [vmem:[%s239 + $0x200] sm:$0xff]
        %v315 = vld [vmem:[%s239 + $0x208] sm:$0xff]
        %v316 = vld [vmem:[%s239 + $0x210] sm:$0xff]
        %v317 = vld [vmem:[%s239 + $0x218] sm:$0xff]
        %v318 = vld [vmem:[%s239 + $0x220] sm:$0xff]
        %v319 = vld [vmem:[%s239 + $0x228] sm:$0xff]
        %v320 = vld [vmem:[%s239 + $0x230] sm:$0xff]
        %v321 = vld [vmem:[%s239 + $0x238] sm:$0xff]
        %v322 = vld [vmem:[%s239 + $0x240] sm:$0xff]
        %v323 = vld [vmem:[%s239 + $0x248] sm:$0xff]
        %v324 = vld [vmem:[%s239 + $0x250] sm:$0xff]
        %v325 = vld [vmem:[%s239 + $0x258] sm:$0xff]
        %v326 = vld [vmem:[%s239 + $0x260] sm:$0xff]
        %v327 = vld [vmem:[%s239 + $0x268] sm:$0xff]
        %v328 = vld [vmem:[%s239 + $0x270] sm:$0xff]
        %v329 = vld [vmem:[%s239 + $0x278] sm:$0xff]
        %330 = vxpose.xlu0.b32.start [1/16] %v250, 128
        %331 = vxpose.xlu0.b32.cont [2/16] %v251, 128
        %332 = vxpose.xlu0.b32.cont [3/16] %v252, 128
        %333 = vxpose.xlu0.b32.cont [4/16] %v253, 128
        %334 = vxpose.xlu0.b32.cont [5/16] %v254, 128
        %335 = vxpose.xlu0.b32.cont [6/16] %v255, 128
        %336 = vxpose.xlu0.b32.cont [7/16] %v256, 128
        %337 = vxpose.xlu0.b32.cont [8/16] %v257, 128
        %338 = vxpose.xlu0.b32.cont [9/16] %v258, 128
        %339 = vxpose.xlu0.b32.cont [10/16] %v259, 128
        %340 = vxpose.xlu0.b32.cont [11/16] %v260, 128
        %341 = vxpose.xlu0.b32.cont [12/16] %v261, 128
        %342 = vxpose.xlu0.b32.cont [13/16] %v262, 128
        %343 = vxpose.xlu0.b32.cont [14/16] %v263, 128
        %344 = vxpose.xlu0.b32.cont [15/16] %v264, 128
        %345 = vxpose.xlu0.b32.end [16/16] %v265, 128
        %v346 = vpop.trf.xlu0
        %v347 = vpop.trf.xlu0
        %v348 = vpop.trf.xlu0
        %v349 = vpop.trf.xlu0
        %v350 = vpop.trf.xlu0
        %v351 = vpop.trf.xlu0
        %v352 = vpop.trf.xlu0
        %v353 = vpop.trf.xlu0
        %v354 = vpop.trf.xlu0
        %v355 = vpop.trf.xlu0
        %v356 = vpop.trf.xlu0
        %v357 = vpop.trf.xlu0
        %v358 = vpop.trf.xlu0
        %v359 = vpop.trf.xlu0
        %v360 = vpop.trf.xlu0
        %v361 = vpop.trf.xlu0
        %362 = vxpose.xlu0.b32.start [1/16] %v266, 128
        %363 = vxpose.xlu0.b32.cont [2/16] %v267, 128
        %364 = vxpose.xlu0.b32.cont [3/16] %v268, 128
        %365 = vxpose.xlu0.b32.cont [4/16] %v269, 128
        %366 = vxpose.xlu0.b32.cont [5/16] %v270, 128
        %367 = vxpose.xlu0.b32.cont [6/16] %v271, 128
        %368 = vxpose.xlu0.b32.cont [7/16] %v272, 128
        %369 = vxpose.xlu0.b32.cont [8/16] %v273, 128
        %370 = vxpose.xlu0.b32.cont [9/16] %v274, 128
        %371 = vxpose.xlu0.b32.cont [10/16] %v275, 128
        %372 = vxpose.xlu0.b32.cont [11/16] %v276, 128
        %373 = vxpose.xlu0.b32.cont [12/16] %v277, 128
        %374 = vxpose.xlu0.b32.cont [13/16] %v278, 128
        %375 = vxpose.xlu0.b32.cont [14/16] %v279, 128
        %376 = vxpose.xlu0.b32.cont [15/16] %v280, 128
        %377 = vxpose.xlu0.b32.end [16/16] %v281, 128
        %v378 = vpop.trf.xlu0
        %v379 = vpop.trf.xlu0
        %v380 = vpop.trf.xlu0
        %v381 = vpop.trf.xlu0
        %v382 = vpop.trf.xlu0
        %v383 = vpop.trf.xlu0
        %v384 = vpop.trf.xlu0
        %v385 = vpop.trf.xlu0
        %v386 = vpop.trf.xlu0
        %v387 = vpop.trf.xlu0
        %v388 = vpop.trf.xlu0
        %v389 = vpop.trf.xlu0
        %v390 = vpop.trf.xlu0
        %v391 = vpop.trf.xlu0
        %v392 = vpop.trf.xlu0
        %v393 = vpop.trf.xlu0
        %394 = vxpose.xlu0.b32.start [1/16] %v282, 128
        %395 = vxpose.xlu0.b32.cont [2/16] %v283, 128
        %396 = vxpose.xlu0.b32.cont [3/16] %v284, 128
        %397 = vxpose.xlu0.b32.cont [4/16] %v285, 128
        %398 = vxpose.xlu0.b32.cont [5/16] %v286, 128
        %399 = vxpose.xlu0.b32.cont [6/16] %v287, 128
        %400 = vxpose.xlu0.b32.cont [7/16] %v288, 128
        %401 = vxpose.xlu0.b32.cont [8/16] %v289, 128
        %402 = vxpose.xlu0.b32.cont [9/16] %v290, 128
        %403 = vxpose.xlu0.b32.cont [10/16] %v291, 128
        %404 = vxpose.xlu0.b32.cont [11/16] %v292, 128
        %405 = vxpose.xlu0.b32.cont [12/16] %v293, 128
        %406 = vxpose.xlu0.b32.cont [13/16] %v294, 128
        %407 = vxpose.xlu0.b32.cont [14/16] %v295, 128
        %408 = vxpose.xlu0.b32.cont [15/16] %v296, 128
        %409 = vxpose.xlu0.b32.end [16/16] %v297, 128
        %v410 = vpop.trf.xlu0
        %v411 = vpop.trf.xlu0
        %v412 = vpop.trf.xlu0
        %v413 = vpop.trf.xlu0
        %v414 = vpop.trf.xlu0
        %v415 = vpop.trf.xlu0
        %v416 = vpop.trf.xlu0
        %v417 = vpop.trf.xlu0
        %v418 = vpop.trf.xlu0
        %v419 = vpop.trf.xlu0
        %v420 = vpop.trf.xlu0
        %v421 = vpop.trf.xlu0
        %v422 = vpop.trf.xlu0
        %v423 = vpop.trf.xlu0
        %v424 = vpop.trf.xlu0
        %v425 = vpop.trf.xlu0
        %426 = vxpose.xlu0.b32.start [1/16] %v298, 128
        %427 = vxpose.xlu0.b32.cont [2/16] %v299, 128
        %428 = vxpose.xlu0.b32.cont [3/16] %v300, 128
        %429 = vxpose.xlu0.b32.cont [4/16] %v301, 128
        %430 = vxpose.xlu0.b32.cont [5/16] %v302, 128
        %431 = vxpose.xlu0.b32.cont [6/16] %v303, 128
        %432 = vxpose.xlu0.b32.cont [7/16] %v304, 128
        %433 = vxpose.xlu0.b32.cont [8/16] %v305, 128
        %434 = vxpose.xlu0.b32.cont [9/16] %v306, 128
        %435 = vxpose.xlu0.b32.cont [10/16] %v307, 128
        %436 = vxpose.xlu0.b32.cont [11/16] %v308, 128
        %437 = vxpose.xlu0.b32.cont [12/16] %v309, 128
        %438 = vxpose.xlu0.b32.cont [13/16] %v310, 128
        %439 = vxpose.xlu0.b32.cont [14/16] %v311, 128
        %440 = vxpose.xlu0.b32.cont [15/16] %v312, 128
        %441 = vxpose.xlu0.b32.end [16/16] %v313, 128
        %v442 = vpop.trf.xlu0
        %v443 = vpop.trf.xlu0
        %v444 = vpop.trf.xlu0
        %v445 = vpop.trf.xlu0
        %v446 = vpop.trf.xlu0
        %v447 = vpop.trf.xlu0
        %v448 = vpop.trf.xlu0
        %v449 = vpop.trf.xlu0
        %v450 = vpop.trf.xlu0
        %v451 = vpop.trf.xlu0
        %v452 = vpop.trf.xlu0
        %v453 = vpop.trf.xlu0
        %v454 = vpop.trf.xlu0
        %v455 = vpop.trf.xlu0
        %v456 = vpop.trf.xlu0
        %v457 = vpop.trf.xlu0
        %458 = vxpose.xlu0.b32.start [1/16] %v314, 128
        %459 = vxpose.xlu0.b32.cont [2/16] %v315, 128
        %460 = vxpose.xlu0.b32.cont [3/16] %v316, 128
        %461 = vxpose.xlu0.b32.cont [4/16] %v317, 128
        %462 = vxpose.xlu0.b32.cont [5/16] %v318, 128
        %463 = vxpose.xlu0.b32.cont [6/16] %v319, 128
        %464 = vxpose.xlu0.b32.cont [7/16] %v320, 128
        %465 = vxpose.xlu0.b32.cont [8/16] %v321, 128
        %466 = vxpose.xlu0.b32.cont [9/16] %v322, 128
        %467 = vxpose.xlu0.b32.cont [10/16] %v323, 128
        %468 = vxpose.xlu0.b32.cont [11/16] %v324, 128
        %469 = vxpose.xlu0.b32.cont [12/16] %v325, 128
        %470 = vxpose.xlu0.b32.cont [13/16] %v326, 128
        %471 = vxpose.xlu0.b32.cont [14/16] %v327, 128
        %472 = vxpose.xlu0.b32.cont [15/16] %v328, 128
        %473 = vxpose.xlu0.b32.end [16/16] %v329, 128
        %v474 = vpop.trf.xlu0
        %v475 = vpop.trf.xlu0
        %v476 = vpop.trf.xlu0
        %v477 = vpop.trf.xlu0
        %v478 = vpop.trf.xlu0
        %v479 = vpop.trf.xlu0
        %v480 = vpop.trf.xlu0
        %v481 = vpop.trf.xlu0
        %v482 = vpop.trf.xlu0
        %v483 = vpop.trf.xlu0
        %v484 = vpop.trf.xlu0
        %v485 = vpop.trf.xlu0
        %v486 = vpop.trf.xlu0
        %v487 = vpop.trf.xlu0
        %v488 = vpop.trf.xlu0
        %v489 = vpop.trf.xlu0
        %v490 = vld [vmem:[%s1] sm:$0xff]
        %v491 = vld [vmem:[%s1 + $0x8] sm:$0xff]
        %v492 = vld [vmem:[%s1 + $0x10] sm:$0xff]
        %v493 = vld [vmem:[%s1 + $0x18] sm:$0xff]
        %v494 = vld [vmem:[%s2] sm:$0xff]
        %v495 = vld [vmem:[%s2 + $0x8] sm:$0xff]
        %v496 = vld [vmem:[%s2 + $0x10] sm:$0xff]
        %v497 = vld [vmem:[%s2 + $0x18] sm:$0xff]
        %499 = vset.pattern.permute.xlu0 0
        %500 = vperm.xlu0 %499, %v490
        %v501 = vpop.permute.xlu0 %500
        %504 = vset.pattern.permute.xlu0 0
        %505 = vperm.xlu0 %504, %v491
        %v506 = vpop.permute.xlu0 %505
        %509 = vset.pattern.permute.xlu0 0
        %510 = vperm.xlu0 %509, %v492
        %v511 = vpop.permute.xlu0 %510
        %514 = vset.pattern.permute.xlu0 0
        %515 = vperm.xlu0 %514, %v493
        %v516 = vpop.permute.xlu0 %515
        %v518 = vlaneseq
        %v519 = vshrl.u32 %v518, 7
        %v520 = vsub.s32 0, %v519
        %v521 = vrot.slane %v346, %v520
        %v522 = vlaneseq
        %v523 = vshrl.u32 %v522, 7
        %v524 = vsub.s32 0, %v523
        %v525 = vrot.slane %v378, %v524
        %v526 = vlaneseq
        %v527 = vshrl.u32 %v526, 7
        %v528 = vsub.s32 0, %v527
        %v529 = vrot.slane %v410, %v528
        %v530 = vlaneseq
        %v531 = vshrl.u32 %v530, 7
        %v532 = vsub.s32 0, %v531
        %v533 = vrot.slane %v442, %v532
        %v534 = vlaneseq
        %v535 = vshrl.u32 %v534, 7
        %v536 = vsub.s32 0, %v535
        %v537 = vrot.slane %v474, %v536
        %v538 = vmul.f32 %v501, %v521
        %v539 = vmul.f32 %v501, %v525
        %v540 = vmul.f32 %v501, %v529
        %v541 = vmul.f32 %v501, %v533
        %v542 = vmul.f32 %v501, %v537
        %v543 = vmul.f32 %v506, %v521
        %v544 = vmul.f32 %v506, %v525
        %v545 = vmul.f32 %v506, %v529
        %v546 = vmul.f32 %v506, %v533
        %v547 = vmul.f32 %v506, %v537
        %v548 = vmul.f32 %v511, %v521
        %v549 = vmul.f32 %v511, %v525
        %v550 = vmul.f32 %v511, %v529
        %v551 = vmul.f32 %v511, %v533
        %v552 = vmul.f32 %v511, %v537
        %v553 = vmul.f32 %v516, %v521
        %v554 = vmul.f32 %v516, %v525
        %v555 = vmul.f32 %v516, %v529
        %v556 = vmul.f32 %v516, %v533
        %v557 = vmul.f32 %v516, %v537
        %559 = vset.pattern.permute.xlu0 0
        %560 = vperm.xlu0 %559, %v494
        %v561 = vpop.permute.xlu0 %560
        %564 = vset.pattern.permute.xlu0 0
        %565 = vperm.xlu0 %564, %v495
        %v566 = vpop.permute.xlu0 %565
        %569 = vset.pattern.permute.xlu0 0
        %570 = vperm.xlu0 %569, %v496
        %v571 = vpop.permute.xlu0 %570
        %574 = vset.pattern.permute.xlu0 0
        %575 = vperm.xlu0 %574, %v497
        %v576 = vpop.permute.xlu0 %575
        %v578 = vadd.f32 %v561, %v538
        %v579 = vadd.f32 %v561, %v539
        %v580 = vadd.f32 %v561, %v540
        %v581 = vadd.f32 %v561, %v541
        %v582 = vadd.f32 %v561, %v542
        %v583 = vadd.f32 %v566, %v543
        %v584 = vadd.f32 %v566, %v544
        %v585 = vadd.f32 %v566, %v545
        %v586 = vadd.f32 %v566, %v546
        %v587 = vadd.f32 %v566, %v547
        %v588 = vadd.f32 %v571, %v548
        %v589 = vadd.f32 %v571, %v549
        %v590 = vadd.f32 %v571, %v550
        %v591 = vadd.f32 %v571, %v551
        %v592 = vadd.f32 %v571, %v552
        %v593 = vadd.f32 %v576, %v553
        %v594 = vadd.f32 %v576, %v554
        %v595 = vadd.f32 %v576, %v555
        %v596 = vadd.f32 %v576, %v556
        %v597 = vadd.f32 %v576, %v557
        %598 = vset.pattern.permute.xlu0 1
        %599 = vperm.xlu0 %598, %v490
        %v600 = vpop.permute.xlu0 %599
        %602 = vset.pattern.permute.xlu0 1
        %603 = vperm.xlu0 %602, %v491
        %v604 = vpop.permute.xlu0 %603
        %606 = vset.pattern.permute.xlu0 1
        %607 = vperm.xlu0 %606, %v492
        %v608 = vpop.permute.xlu0 %607
        %610 = vset.pattern.permute.xlu0 1
        %611 = vperm.xlu0 %610, %v493
        %v612 = vpop.permute.xlu0 %611
        %v614 = vlaneseq
        %v615 = vshrl.u32 %v614, 7
        %v616 = vsub.s32 1, %v615
        %v617 = vrot.slane %v346, %v616
        %v618 = vlaneseq
        %v619 = vshrl.u32 %v618, 7
        %v620 = vsub.s32 1, %v619
        %v621 = vrot.slane %v378, %v620
        %v622 = vlaneseq
        %v623 = vshrl.u32 %v622, 7
        %v624 = vsub.s32 1, %v623
        %v625 = vrot.slane %v410, %v624
        %v626 = vlaneseq
        %v627 = vshrl.u32 %v626, 7
        %v628 = vsub.s32 1, %v627
        %v629 = vrot.slane %v442, %v628
        %v630 = vlaneseq
        %v631 = vshrl.u32 %v630, 7
        %v632 = vsub.s32 1, %v631
        %v633 = vrot.slane %v474, %v632
        %v634 = vmul.f32 %v600, %v617
        %v635 = vmul.f32 %v600, %v621
        %v636 = vmul.f32 %v600, %v625
        %v637 = vmul.f32 %v600, %v629
        %v638 = vmul.f32 %v600, %v633
        %v639 = vmul.f32 %v604, %v617
        %v640 = vmul.f32 %v604, %v621
        %v641 = vmul.f32 %v604, %v625
        %v642 = vmul.f32 %v604, %v629
        %v643 = vmul.f32 %v604, %v633
        %v644 = vmul.f32 %v608, %v617
        %v645 = vmul.f32 %v608, %v621
        %v646 = vmul.f32 %v608, %v625
        %v647 = vmul.f32 %v608, %v629
        %v648 = vmul.f32 %v608, %v633
        %v649 = vmul.f32 %v612, %v617
        %v650 = vmul.f32 %v612, %v621
        %v651 = vmul.f32 %v612, %v625
        %v652 = vmul.f32 %v612, %v629
        %v653 = vmul.f32 %v612, %v633
        %v654 = vadd.f32 %v578, %v634
        %v655 = vadd.f32 %v579, %v635
        %v656 = vadd.f32 %v580, %v636
        %v657 = vadd.f32 %v581, %v637
        %v658 = vadd.f32 %v582, %v638
        %v659 = vadd.f32 %v583, %v639
        %v660 = vadd.f32 %v584, %v640
        %v661 = vadd.f32 %v585, %v641
        %v662 = vadd.f32 %v586, %v642
        %v663 = vadd.f32 %v587, %v643
        %v664 = vadd.f32 %v588, %v644
        %v665 = vadd.f32 %v589, %v645
        %v666 = vadd.f32 %v590, %v646
        %v667 = vadd.f32 %v591, %v647
        %v668 = vadd.f32 %v592, %v648
        %v669 = vadd.f32 %v593, %v649
        %v670 = vadd.f32 %v594, %v650
        %v671 = vadd.f32 %v595, %v651
        %v672 = vadd.f32 %v596, %v652
        %v673 = vadd.f32 %v597, %v653
        %674 = vset.pattern.permute.xlu0 2
        %675 = vperm.xlu0 %674, %v490
        %v676 = vpop.permute.xlu0 %675
        %678 = vset.pattern.permute.xlu0 2
        %679 = vperm.xlu0 %678, %v491
        %v680 = vpop.permute.xlu0 %679
        %682 = vset.pattern.permute.xlu0 2
        %683 = vperm.xlu0 %682, %v492
        %v684 = vpop.permute.xlu0 %683
        %686 = vset.pattern.permute.xlu0 2
        %687 = vperm.xlu0 %686, %v493
        %v688 = vpop.permute.xlu0 %687
        %v690 = vlaneseq
        %v691 = vshrl.u32 %v690, 7
        %v692 = vsub.s32 2, %v691
        %v693 = vrot.slane %v346, %v692
        %v694 = vlaneseq
        %v695 = vshrl.u32 %v694, 7
        %v696 = vsub.s32 2, %v695
        %v697 = vrot.slane %v378, %v696
        %v698 = vlaneseq
        %v699 = vshrl.u32 %v698, 7
        %v700 = vsub.s32 2, %v699
        %v701 = vrot.slane %v410, %v700
        %v702 = vlaneseq
        %v703 = vshrl.u32 %v702, 7
        %v704 = vsub.s32 2, %v703
        %v705 = vrot.slane %v442, %v704
        %v706 = vlaneseq
        %v707 = vshrl.u32 %v706, 7
        %v708 = vsub.s32 2, %v707
        %v709 = vrot.slane %v474, %v708
        %v710 = vmul.f32 %v676, %v693
        %v711 = vmul.f32 %v676, %v697
        %v712 = vmul.f32 %v676, %v701
        %v713 = vmul.f32 %v676, %v705
        %v714 = vmul.f32 %v676, %v709
        %v715 = vmul.f32 %v680, %v693
        %v716 = vmul.f32 %v680, %v697
        %v717 = vmul.f32 %v680, %v701
        %v718 = vmul.f32 %v680, %v705
        %v719 = vmul.f32 %v680, %v709
        %v720 = vmul.f32 %v684, %v693
        %v721 = vmul.f32 %v684, %v697
        %v722 = vmul.f32 %v684, %v701
        %v723 = vmul.f32 %v684, %v705
        %v724 = vmul.f32 %v684, %v709
        %v725 = vmul.f32 %v688, %v693
        %v726 = vmul.f32 %v688, %v697
        %v727 = vmul.f32 %v688, %v701
        %v728 = vmul.f32 %v688, %v705
        %v729 = vmul.f32 %v688, %v709
        %v730 = vadd.f32 %v654, %v710
        %v731 = vadd.f32 %v655, %v711
        %v732 = vadd.f32 %v656, %v712
        %v733 = vadd.f32 %v657, %v713
        %v734 = vadd.f32 %v658, %v714
        %v735 = vadd.f32 %v659, %v715
        %v736 = vadd.f32 %v660, %v716
        %v737 = vadd.f32 %v661, %v717
        %v738 = vadd.f32 %v662, %v718
        %v739 = vadd.f32 %v663, %v719
        %v740 = vadd.f32 %v664, %v720
        %v741 = vadd.f32 %v665, %v721
        %v742 = vadd.f32 %v666, %v722
        %v743 = vadd.f32 %v667, %v723
        %v744 = vadd.f32 %v668, %v724
        %v745 = vadd.f32 %v669, %v725
        %v746 = vadd.f32 %v670, %v726
        %v747 = vadd.f32 %v671, %v727
        %v748 = vadd.f32 %v672, %v728
        %v749 = vadd.f32 %v673, %v729
        %750 = vset.pattern.permute.xlu0 3
        %751 = vperm.xlu0 %750, %v490
        %v752 = vpop.permute.xlu0 %751
        %754 = vset.pattern.permute.xlu0 3
        %755 = vperm.xlu0 %754, %v491
        %v756 = vpop.permute.xlu0 %755
        %758 = vset.pattern.permute.xlu0 3
        %759 = vperm.xlu0 %758, %v492
        %v760 = vpop.permute.xlu0 %759
        %762 = vset.pattern.permute.xlu0 3
        %763 = vperm.xlu0 %762, %v493
        %v764 = vpop.permute.xlu0 %763
        %v766 = vlaneseq
        %v767 = vshrl.u32 %v766, 7
        %v768 = vsub.s32 3, %v767
        %v769 = vrot.slane %v346, %v768
        %v770 = vlaneseq
        %v771 = vshrl.u32 %v770, 7
        %v772 = vsub.s32 3, %v771
        %v773 = vrot.slane %v378, %v772
        %v774 = vlaneseq
        %v775 = vshrl.u32 %v774, 7
        %v776 = vsub.s32 3, %v775
        %v777 = vrot.slane %v410, %v776
        %v778 = vlaneseq
        %v779 = vshrl.u32 %v778, 7
        %v780 = vsub.s32 3, %v779
        %v781 = vrot.slane %v442, %v780
        %v782 = vlaneseq
        %v783 = vshrl.u32 %v782, 7
        %v784 = vsub.s32 3, %v783
        %v785 = vrot.slane %v474, %v784
        %v786 = vmul.f32 %v752, %v769
        %v787 = vmul.f32 %v752, %v773
        %v788 = vmul.f32 %v752, %v777
        %v789 = vmul.f32 %v752, %v781
        %v790 = vmul.f32 %v752, %v785
        %v791 = vmul.f32 %v756, %v769
        %v792 = vmul.f32 %v756, %v773
        %v793 = vmul.f32 %v756, %v777
        %v794 = vmul.f32 %v756, %v781
        %v795 = vmul.f32 %v756, %v785
        %v796 = vmul.f32 %v760, %v769
        %v797 = vmul.f32 %v760, %v773
        %v798 = vmul.f32 %v760, %v777
        %v799 = vmul.f32 %v760, %v781
        %v800 = vmul.f32 %v760, %v785
        %v801 = vmul.f32 %v764, %v769
        %v802 = vmul.f32 %v764, %v773
        %v803 = vmul.f32 %v764, %v777
        %v804 = vmul.f32 %v764, %v781
        %v805 = vmul.f32 %v764, %v785
        %v806 = vadd.f32 %v730, %v786
        %v807 = vadd.f32 %v731, %v787
        %v808 = vadd.f32 %v732, %v788
        %v809 = vadd.f32 %v733, %v789
        %v810 = vadd.f32 %v734, %v790
        %v811 = vadd.f32 %v735, %v791
        %v812 = vadd.f32 %v736, %v792
        %v813 = vadd.f32 %v737, %v793
        %v814 = vadd.f32 %v738, %v794
        %v815 = vadd.f32 %v739, %v795
        %v816 = vadd.f32 %v740, %v796
        %v817 = vadd.f32 %v741, %v797
        %v818 = vadd.f32 %v742, %v798
        %v819 = vadd.f32 %v743, %v799
        %v820 = vadd.f32 %v744, %v800
        %v821 = vadd.f32 %v745, %v801
        %v822 = vadd.f32 %v746, %v802
        %v823 = vadd.f32 %v747, %v803
        %v824 = vadd.f32 %v748, %v804
        %v825 = vadd.f32 %v749, %v805
        %v826 = vxor.u32 %v806, 2147483648
        %v827 = vxor.u32 %v807, 2147483648
        %v828 = vxor.u32 %v808, 2147483648
        %v829 = vxor.u32 %v809, 2147483648
        %v830 = vxor.u32 %v810, 2147483648
        %v831 = vxor.u32 %v811, 2147483648
        %v832 = vxor.u32 %v812, 2147483648
        %v833 = vxor.u32 %v813, 2147483648
        %v834 = vxor.u32 %v814, 2147483648
        %v835 = vxor.u32 %v815, 2147483648
        %v836 = vxor.u32 %v816, 2147483648
        %v837 = vxor.u32 %v817, 2147483648
        %v838 = vxor.u32 %v818, 2147483648
        %v839 = vxor.u32 %v819, 2147483648
        %v840 = vxor.u32 %v820, 2147483648
        %v841 = vxor.u32 %v821, 2147483648
        %v842 = vxor.u32 %v822, 2147483648
        %v843 = vxor.u32 %v823, 2147483648
        %v844 = vxor.u32 %v824, 2147483648
        %v845 = vxor.u32 %v825, 2147483648
        %v846 = vmul.f32 %v826, 1.442695
        %v847 = vpow.pop %v846
        %v848 = vmul.f32 %v827, 1.442695
        %v849 = vpow.pop %v848
        %v850 = vmul.f32 %v828, 1.442695
        %v851 = vpow.pop %v850
        %v852 = vmul.f32 %v829, 1.442695
        %v853 = vpow.pop %v852
        %v854 = vmul.f32 %v830, 1.442695
        %v855 = vpow.pop %v854
        %v856 = vmul.f32 %v831, 1.442695
        %v857 = vpow.pop %v856
        %v858 = vmul.f32 %v832, 1.442695
        %v859 = vpow.pop %v858
        %v860 = vmul.f32 %v833, 1.442695
        %v861 = vpow.pop %v860
        %v862 = vmul.f32 %v834, 1.442695
        %v863 = vpow.pop %v862
        %v864 = vmul.f32 %v835, 1.442695
        %v865 = vpow.pop %v864
        %v866 = vmul.f32 %v836, 1.442695
        %v867 = vpow.pop %v866
        %v868 = vmul.f32 %v837, 1.442695
        %v869 = vpow.pop %v868
        %v870 = vmul.f32 %v838, 1.442695
        %v871 = vpow.pop %v870
        %v872 = vmul.f32 %v839, 1.442695
        %v873 = vpow.pop %v872
        %v874 = vmul.f32 %v840, 1.442695
        %v875 = vpow.pop %v874
        %v876 = vmul.f32 %v841, 1.442695
        %v877 = vpow.pop %v876
        %v878 = vmul.f32 %v842, 1.442695
        %v879 = vpow.pop %v878
        %v880 = vmul.f32 %v843, 1.442695
        %v881 = vpow.pop %v880
        %v882 = vmul.f32 %v844, 1.442695
        %v883 = vpow.pop %v882
        %v884 = vmul.f32 %v845, 1.442695
        %v885 = vpow.pop %v884
        %v886 = vadd.f32 %v847, 1.0
        %v887 = vadd.f32 %v849, 1.0
        %v888 = vadd.f32 %v851, 1.0
        %v889 = vadd.f32 %v853, 1.0
        %v890 = vadd.f32 %v855, 1.0
        %v891 = vadd.f32 %v857, 1.0
        %v892 = vadd.f32 %v859, 1.0
        %v893 = vadd.f32 %v861, 1.0
        %v894 = vadd.f32 %v863, 1.0
        %v895 = vadd.f32 %v865, 1.0
        %v896 = vadd.f32 %v867, 1.0
        %v897 = vadd.f32 %v869, 1.0
        %v898 = vadd.f32 %v871, 1.0
        %v899 = vadd.f32 %v873, 1.0
        %v900 = vadd.f32 %v875, 1.0
        %v901 = vadd.f32 %v877, 1.0
        %v902 = vadd.f32 %v879, 1.0
        %v903 = vadd.f32 %v881, 1.0
        %v904 = vadd.f32 %v883, 1.0
        %v905 = vadd.f32 %v885, 1.0
        %v906 = vrcp.pop %v886
        %v907 = vmul.f32 1.0, %v906
        %v908 = vrcp.pop %v887
        %v909 = vmul.f32 1.0, %v908
        %v910 = vrcp.pop %v888
        %v911 = vmul.f32 1.0, %v910
        %v912 = vrcp.pop %v889
        %v913 = vmul.f32 1.0, %v912
        %v914 = vrcp.pop %v890
        %v915 = vmul.f32 1.0, %v914
        %v916 = vrcp.pop %v891
        %v917 = vmul.f32 1.0, %v916
        %v918 = vrcp.pop %v892
        %v919 = vmul.f32 1.0, %v918
        %v920 = vrcp.pop %v893
        %v921 = vmul.f32 1.0, %v920
        %v922 = vrcp.pop %v894
        %v923 = vmul.f32 1.0, %v922
        %v924 = vrcp.pop %v895
        %v925 = vmul.f32 1.0, %v924
        %v926 = vrcp.pop %v896
        %v927 = vmul.f32 1.0, %v926
        %v928 = vrcp.pop %v897
        %v929 = vmul.f32 1.0, %v928
        %v930 = vrcp.pop %v898
        %v931 = vmul.f32 1.0, %v930
        %v932 = vrcp.pop %v899
        %v933 = vmul.f32 1.0, %v932
        %v934 = vrcp.pop %v900
        %v935 = vmul.f32 1.0, %v934
        %v936 = vrcp.pop %v901
        %v937 = vmul.f32 1.0, %v936
        %v938 = vrcp.pop %v902
        %v939 = vmul.f32 1.0, %v938
        %v940 = vrcp.pop %v903
        %v941 = vmul.f32 1.0, %v940
        %v942 = vrcp.pop %v904
        %v943 = vmul.f32 1.0, %v942
        %v944 = vrcp.pop %v905
        %v945 = vmul.f32 1.0, %v944
        %v946 = vld [vmem:[%s3] sm:$0x7]
        %v947 = vld [vmem:[%s4] sm:$0x7]
        %949 = vset.pattern.permute.xlu0 0
        %950 = vperm.xlu0 %949, %v947
        %v951 = vpop.permute.xlu0 %950
        %vm953 = vcmask 261120
        %v955 = vsel %vm953, %v946, 0
        %957 = vmatprep.subr.mxu0 0.0
        %958 = vmatpush1.msra.mxu0 0.0
        %959 = vmatprep.subr.mxu0 0.0
        %960 = vmatpush1.msra.mxu0 0.0
        %961 = vmatprep.subr.mxu0 0.0
        %962 = vmatpush1.msra.mxu0 0.0
        %963 = vmatprep.subr.mxu0 0.0
        %964 = vmatpush1.msra.mxu0 0.0
        %965 = vmatprep.subr.mxu0 0.0
        %966 = vmatpush1.msra.mxu0 0.0
        %967 = vmatprep.subr.mxu0 0.0
        %968 = vmatpush1.msra.mxu0 0.0
        %969 = vmatprep.subr.mxu0 0.0
        %970 = vmatpush1.msra.mxu0 0.0
        %971 = vmatprep.subr.mxu0 0.0
        %972 = vmatpush1.msra.mxu0 0.0
        %973 = vmatprep.subr.mxu0 0.0
        %974 = vmatpush1.msra.mxu0 0.0
        %975 = vmatprep.subr.mxu0 0.0
        %976 = vmatpush1.msra.mxu0 0.0
        %977 = vmatprep.subr.mxu0 0.0
        %978 = vmatpush1.msra.mxu0 0.0
        %979 = vmatprep.subr.mxu0 0.0
        %980 = vmatpush1.msra.mxu0 0.0
        %981 = vmatprep.subr.mxu0 %v939
        %982 = vmatpush1.msra.mxu0 %v937
        %983 = vmatprep.subr.mxu0 %v929
        %984 = vmatpush1.msra.mxu0 %v927
        %985 = vmatprep.subr.mxu0 %v919
        %986 = vmatpush1.msra.mxu0 %v917
        %987 = vmatprep.subr.mxu0 %v909
        %988 = vmatpush1.msra.mxu0 %v907
        %989 = vmatprep.subr.mxu0 0.0
        %990 = vmatpush2.msra.mxu0 0.0
        %991 = vmatprep.subr.mxu0 0.0
        %992 = vmatpush2.msra.mxu0 0.0
        %993 = vmatprep.subr.mxu0 0.0
        %994 = vmatpush2.msra.mxu0 0.0
        %995 = vmatprep.subr.mxu0 0.0
        %996 = vmatpush2.msra.mxu0 0.0
        %997 = vmatprep.subr.mxu0 0.0
        %998 = vmatpush2.msra.mxu0 0.0
        %999 = vmatprep.subr.mxu0 0.0
        %1000 = vmatpush2.msra.mxu0 0.0
        %1001 = vmatprep.subr.mxu0 0.0
        %1002 = vmatpush2.msra.mxu0 0.0
        %1003 = vmatprep.subr.mxu0 0.0
        %1004 = vmatpush2.msra.mxu0 0.0
        %1005 = vmatprep.subr.mxu0 0.0
        %1006 = vmatpush2.msra.mxu0 0.0
        %1007 = vmatprep.subr.mxu0 0.0
        %1008 = vmatpush2.msra.mxu0 0.0
        %1009 = vmatprep.subr.mxu0 0.0
        %1010 = vmatpush2.msra.mxu0 0.0
        %1011 = vmatprep.subr.mxu0 0.0
        %1012 = vmatpush2.msra.mxu0 0.0
        %1013 = vmatprep.subr.mxu0 0.0
        %1014 = vmatpush2.msra.mxu0 0.0
        %1015 = vmatprep.subr.mxu0 0.0
        %1016 = vmatpush2.msra.mxu0 0.0
        %1017 = vmatprep.subr.mxu0 0.0
        %1018 = vmatpush2.msra.mxu0 0.0
        %1019 = vmatprep.subr.mxu0 0.0
        %1020 = vmatpush2.msra.mxu0 0.0
        %1021 = vmatprep.mubr.f32.mxu0 0.0
        %1022 = vmatmul.mubr.f32.gmra.mxu0 %v955
        %v1023 = vpop.f32.mrf.mxu0
        %v1024 = vadd.f32 %v951, %v1023
        %v1025 = vpop.f32.mrf.mxu0
        %v1026 = vadd.f32 %v951, %v1025
        %1027 = vdwg.mxu0
        %1028 = vmatprep.subr.mxu0 0.0
        %1029 = vmatpush1.msra.mxu0 0.0
        %1030 = vmatprep.subr.mxu0 0.0
        %1031 = vmatpush1.msra.mxu0 0.0
        %1032 = vmatprep.subr.mxu0 0.0
        %1033 = vmatpush1.msra.mxu0 0.0
        %1034 = vmatprep.subr.mxu0 0.0
        %1035 = vmatpush1.msra.mxu0 0.0
        %1036 = vmatprep.subr.mxu0 0.0
        %1037 = vmatpush1.msra.mxu0 0.0
        %1038 = vmatprep.subr.mxu0 0.0
        %1039 = vmatpush1.msra.mxu0 0.0
        %1040 = vmatprep.subr.mxu0 0.0
        %1041 = vmatpush1.msra.mxu0 0.0
        %1042 = vmatprep.subr.mxu0 0.0
        %1043 = vmatpush1.msra.mxu0 0.0
        %1044 = vmatprep.subr.mxu0 0.0
        %1045 = vmatpush1.msra.mxu0 0.0
        %1046 = vmatprep.subr.mxu0 0.0
        %1047 = vmatpush1.msra.mxu0 0.0
        %1048 = vmatprep.subr.mxu0 0.0
        %1049 = vmatpush1.msra.mxu0 0.0
        %1050 = vmatprep.subr.mxu0 0.0
        %1051 = vmatpush1.msra.mxu0 0.0
        %1052 = vmatprep.subr.mxu0 %v943
        %1053 = vmatpush1.msra.mxu0 %v941
        %1054 = vmatprep.subr.mxu0 %v933
        %1055 = vmatpush1.msra.mxu0 %v931
        %1056 = vmatprep.subr.mxu0 %v923
        %1057 = vmatpush1.msra.mxu0 %v921
        %1058 = vmatprep.subr.mxu0 %v913
        %1059 = vmatpush1.msra.mxu0 %v911
        %1060 = vmatprep.subr.mxu0 0.0
        %1061 = vmatpush2.msra.mxu0 0.0
        %1062 = vmatprep.subr.mxu0 0.0
        %1063 = vmatpush2.msra.mxu0 0.0
        %1064 = vmatprep.subr.mxu0 0.0
        %1065 = vmatpush2.msra.mxu0 0.0
        %1066 = vmatprep.subr.mxu0 0.0
        %1067 = vmatpush2.msra.mxu0 0.0
        %1068 = vmatprep.subr.mxu0 0.0
        %1069 = vmatpush2.msra.mxu0 0.0
        %1070 = vmatprep.subr.mxu0 0.0
        %1071 = vmatpush2.msra.mxu0 0.0
        %1072 = vmatprep.subr.mxu0 0.0
        %1073 = vmatpush2.msra.mxu0 0.0
        %1074 = vmatprep.subr.mxu0 0.0
        %1075 = vmatpush2.msra.mxu0 0.0
        %1076 = vmatprep.subr.mxu0 0.0
        %1077 = vmatpush2.msra.mxu0 0.0
        %1078 = vmatprep.subr.mxu0 0.0
        %1079 = vmatpush2.msra.mxu0 0.0
        %1080 = vmatprep.subr.mxu0 0.0
        %1081 = vmatpush2.msra.mxu0 0.0
        %1082 = vmatprep.subr.mxu0 0.0
        %1083 = vmatpush2.msra.mxu0 0.0
        %1084 = vmatprep.subr.mxu0 0.0
        %1085 = vmatpush2.msra.mxu0 0.0
        %1086 = vmatprep.subr.mxu0 0.0
        %1087 = vmatpush2.msra.mxu0 0.0
        %1088 = vmatprep.subr.mxu0 0.0
        %1089 = vmatpush2.msra.mxu0 0.0
        %1090 = vmatprep.subr.mxu0 0.0
        %1091 = vmatpush2.msra.mxu0 0.0
        %1092 = vmatprep.mubr.f32.mxu0 0.0
        %1093 = vmatmul.mubr.f32.gmra.mxu0 %v955
        %v1094 = vpop.f32.mrf.mxu0
        %v1095 = vadd.f32 %v951, %v1094
        %v1096 = vpop.f32.mrf.mxu0
        %v1097 = vadd.f32 %v951, %v1096
        %1098 = vdwg.mxu0
        %1099 = vmatprep.subr.mxu0 0.0
        %1100 = vmatpush1.msra.mxu0 0.0
        %1101 = vmatprep.subr.mxu0 0.0
        %1102 = vmatpush1.msra.mxu0 0.0
        %1103 = vmatprep.subr.mxu0 0.0
        %1104 = vmatpush1.msra.mxu0 0.0
        %1105 = vmatprep.subr.mxu0 0.0
        %1106 = vmatpush1.msra.mxu0 0.0
        %1107 = vmatprep.subr.mxu0 0.0
        %1108 = vmatpush1.msra.mxu0 0.0
        %1109 = vmatprep.subr.mxu0 0.0
        %1110 = vmatpush1.msra.mxu0 0.0
        %1111 = vmatprep.subr.mxu0 0.0
        %1112 = vmatpush1.msra.mxu0 0.0
        %1113 = vmatprep.subr.mxu0 0.0
        %1114 = vmatpush1.msra.mxu0 0.0
        %1115 = vmatprep.subr.mxu0 0.0
        %1116 = vmatpush1.msra.mxu0 0.0
        %1117 = vmatprep.subr.mxu0 0.0
        %1118 = vmatpush1.msra.mxu0 0.0
        %1119 = vmatprep.subr.mxu0 0.0
        %1120 = vmatpush1.msra.mxu0 0.0
        %1121 = vmatprep.subr.mxu0 0.0
        %1122 = vmatpush1.msra.mxu0 0.0
        %1123 = vmatprep.subr.mxu0 0.0
        %1124 = vmatpush1.msra.mxu0 %v945
        %1125 = vmatprep.subr.mxu0 0.0
        %1126 = vmatpush1.msra.mxu0 %v935
        %1127 = vmatprep.subr.mxu0 0.0
        %1128 = vmatpush1.msra.mxu0 %v925
        %1129 = vmatprep.subr.mxu0 0.0
        %1130 = vmatpush1.msra.mxu0 %v915
        %1131 = vmatprep.subr.mxu0 0.0
        %1132 = vmatpush2.msra.mxu0 0.0
        %1133 = vmatprep.subr.mxu0 0.0
        %1134 = vmatpush2.msra.mxu0 0.0
        %1135 = vmatprep.subr.mxu0 0.0
        %1136 = vmatpush2.msra.mxu0 0.0
        %1137 = vmatprep.subr.mxu0 0.0
        %1138 = vmatpush2.msra.mxu0 0.0
        %1139 = vmatprep.subr.mxu0 0.0
        %1140 = vmatpush2.msra.mxu0 0.0
        %1141 = vmatprep.subr.mxu0 0.0
        %1142 = vmatpush2.msra.mxu0 0.0
        %1143 = vmatprep.subr.mxu0 0.0
        %1144 = vmatpush2.msra.mxu0 0.0
        %1145 = vmatprep.subr.mxu0 0.0
        %1146 = vmatpush2.msra.mxu0 0.0
        %1147 = vmatprep.subr.mxu0 0.0
        %1148 = vmatpush2.msra.mxu0 0.0
        %1149 = vmatprep.subr.mxu0 0.0
        %1150 = vmatpush2.msra.mxu0 0.0
        %1151 = vmatprep.subr.mxu0 0.0
        %1152 = vmatpush2.msra.mxu0 0.0
        %1153 = vmatprep.subr.mxu0 0.0
        %1154 = vmatpush2.msra.mxu0 0.0
        %1155 = vmatprep.subr.mxu0 0.0
        %1156 = vmatpush2.msra.mxu0 0.0
        %1157 = vmatprep.subr.mxu0 0.0
        %1158 = vmatpush2.msra.mxu0 0.0
        %1159 = vmatprep.subr.mxu0 0.0
        %1160 = vmatpush2.msra.mxu0 0.0
        %1161 = vmatprep.subr.mxu0 0.0
        %1162 = vmatpush2.msra.mxu0 0.0
        %1163 = vmatprep.mubr.f32.mxu0 0.0
        %1164 = vmatmul.mubr.f32.gmra.mxu0 %v955
        %v1165 = vpop.f32.mrf.mxu0
        %v1166 = vadd.f32 %v951, %v1165
        %v1167 = vpop.f32.mrf.mxu0
        %1168 = vdwg.mxu0
        %v1173 = vcombine.low %v1024, %v1026
        %v1174 = vcombine.low %v1095, %v1097
        %1177 = vst [vmem:[%s230] sm:$0x77] %v1173
        %1178 = vst [vmem:[%s230 + $0x8] sm:$0x77] %v1174
        %1179 = vst [vmem:[%s230 + $0x10] sm:$0x7] %v1166
        %s1180 = sand.u32 %s137, 1
        %s1181 = scalar_lea.sflag [#allocation3], %s1180
        %s1182 = sand.u32 %s137, 1
        %s1183 = smul.addr %s1182, 20
        %s1184 = scalar_lea.vmem [#allocation2], %s1183
        // Predicated region
        $region41: #{fc_baseline_forward.1} parent=39 // pred_check
          %p1185 = pneg %p147
        $region42: #{fc_baseline_forward.1} parent=39 // pred_check_branch
          %1187 = sbr.rel (%p1185) target = $region44
        $region43: #{fc_baseline_forward.1} parent=39 // pred_region
          %s1188 = smul.u32 5, %s19
          %s1189 = ssub.s32 9, %s1188
          %p1190 = scmp.lt.s32.totalorder %s1189, 5
          %s1191 = scalar_select %p1190, %s1189, 5
          %s1192 = smul.u32 64, %s1191
          %s1194 = ssub.s32 320, %s1192
          %1195 = vsyncadd %s1181, %s1194
          %p1196 = scmp.ne.s32.totalorder 0, %s1192
          %s1197 = smul.addr %s1188, 64
          %s1198 = scalar_lea.hbm %s5, %s1197
          %s1199 = smul.u32 %s1191, 4
          %s1200 = sshll.u32 %s1199, 4
          %s1201 = sshll.u32 %s1184, 4
          %s1202 = int_to_ptr.vmem [resolvable:$true] %s1201
          %1204 = dma.vmem_to_hbm [thread:$0]  (%p1196), %s1202, %s1200, %s1198, %s1181
        $region44: #{fc_baseline_forward.1} parent=39 // pred_fallthru
          _
      $region40: #{fc_baseline_forward.1} parent=5 // pred_fallthru
        _
      %p1205 = scmp.le.s32.totalorder 2, %s14
      // Predicated region
      $region45: #{fc_baseline_forward.1} parent=5 // pred_check
        %p1206 = pneg %p1205
      $region46: #{fc_baseline_forward.1} parent=5 // pred_check_branch
        %1208 = sbr.rel (%p1206) target = $region48
      $region47: #{fc_baseline_forward.1} parent=5 // pred_region
        %s1209 = ssub.s32 %s14, 2
        // Predicated region
        $region49: #{fc_baseline_forward.1} parent=47 // pred_check
          %p1210 = pneg %p153
        $region50: #{fc_baseline_forward.1} parent=47 // pred_check_branch
          %1212 = sbr.rel (%p1210) target = $region52
        $region51: #{fc_baseline_forward.1} parent=47 // pred_region
          %s1213 = sand.u32 %s138, 1
          %s1214 = scalar_lea.sflag [#allocation3], %s1213
          %s1215 = sand.u32 %s138, 1
          %s1216 = smul.addr %s1215, 20
          %s1217 = scalar_lea.vmem [#allocation2], %s1216
          %1218 = dma.done %s1214, 320
        $region52: #{fc_baseline_forward.1} parent=47 // pred_fallthru
          _
      $region48: #{fc_baseline_forward.1} parent=5 // pred_fallthru
        _
    $region6: #{fc_baseline_forward.1} parent=1 // loop_footer
      %s18 = sadd.s32 1, %s14
    $region7: #{fc_baseline_forward.1} parent=1 // loop_footer_branch
      %13 = sbr.rel target = $region3
    $region8: #{fc_baseline_forward.1} parent=1 // loop_exit
      _
    %1219 = vsyncpa [#allocation3], 1
    %s1220 = scalar_lea.sflag [#allocation3], 1
    %1221 = vsyncpa %s1220, 1

</llo_original>
